<compile_context>
chip_gen: v5e
topology: v5e:2x2
jax: 0.10.0
libtpu: 0.0.40
codegen_flags: <defaults>
</compile_context>

<pallas_src>
import jax
import jax.numpy as jnp
from jax import lax
from jax.experimental import pallas as pl
from jax.experimental.pallas import tpu as pltpu


def _npid_head_kernel(x_ref, w_ref, b_ref, o_ref):
    # Linear: y = x @ W, x: (tile_b, in_dim) bf16, W: (in_dim, out_pad) bf16,
    # f32 accumulation on the MXU.
    y = jnp.dot(x_ref[...], w_ref[...], preferred_element_type=jnp.float32)
    y = y + b_ref[...]  # (1, out_pad) f32 bias broadcasts over the batch tile

    # F.normalize(y, p=2, dim=1, eps=1e-12) == y / max(||y||_2, 1e-12)
    #   == y * rsqrt(max(||y||^2, 1e-24))      (rsqrt -> EUP slot, ~free)
    ss = jnp.sum(y * y, axis=-1, keepdims=True)
    inv = lax.rsqrt(jnp.maximum(ss, 1e-24))
    o_ref[...] = (y * inv).astype(o_ref.dtype)


def _round_up(n, m):
    return ((n + m - 1) // m) * m


def npid_head(x, weight, bias, *, tile_b=512, out_dtype=None):
    """x: (B, in_dim); weight: (out_dim, in_dim) (nn.Linear layout); bias: (out_dim,)."""
    B, in_dim = x.shape
    out_dim = weight.shape[0]
    out_dtype = out_dtype or x.dtype

    # Lane-dense output: pad out_dim to a multiple of 128 only (zero cols/bias
    # entries contribute nothing to the row norm), slice back after the call.
    out_pad = _round_up(out_dim, 128)
    if out_pad != out_dim:
        weight = jnp.pad(weight, ((0, out_pad - out_dim), (0, 0)))
        bias = jnp.pad(bias, (0, out_pad - out_dim))

    # One-time XLA-side transpose + bf16 cast: weight into (K, N) MXU layout.
    w_t = weight.T.astype(jnp.bfloat16)            # (in_dim, out_pad)
    b2 = bias.reshape(1, out_pad).astype(jnp.float32)
    x_b = x.astype(jnp.bfloat16)
    # TODO(synk): if the upstream producer already emits bf16 activations, pass
    # them straight through and skip this cast entirely.

    # Batch tile: multiple of 8 (f32/bf16 sublane packing), never larger than the
    # batch, and capped at ~B/2 so the parallel axis has >=2 steps (v7x megacore).
    half_b = _round_up(max(1, -(-B // 2)), 8)
    tile_b = max(8, min(_round_up(tile_b, 8), half_b, _round_up(B, 8)))
    grid = (pl.cdiv(B, tile_b),)

    cost = pl.CostEstimate(
        flops=2 * B * in_dim * out_pad,
        transcendentals=B,
        bytes_accessed=(B * in_dim * 2            # x (bf16)
                        + in_dim * out_pad * 2    # weight (bf16), read once
                        + B * out_pad * jnp.dtype(out_dtype).itemsize),
    )

    out = pl.pallas_call(
        _npid_head_kernel,
        out_shape=jax.ShapeDtypeStruct((B, out_pad), out_dtype),
        grid_spec=pltpu.PrefetchScalarGridSpec(
            num_scalar_prefetch=0,
            grid=grid,
            in_specs=[
                # x: streamed per batch tile (double-buffered by the pipeline).
                pl.BlockSpec((tile_b, in_dim), lambda i: (i, 0)),
                # weight / bias: constant index_map -> VMEM-resident across the
                # grid; single-buffered to halve their VMEM footprint.
                pl.BlockSpec((in_dim, out_pad), lambda i: (0, 0),
                             pipeline_mode=pl.Buffered(1)),
                pl.BlockSpec((1, out_pad), lambda i: (0, 0),
                             pipeline_mode=pl.Buffered(1)),
            ],
            out_specs=pl.BlockSpec((tile_b, out_pad), lambda i: (i, 0)),
        ),
        compiler_params=pltpu.CompilerParams(
            dimension_semantics=("parallel",)),
        cost_estimate=cost,
    )(x_b, w_t, b2)

    return out[:, :out_dim]


if __name__ == "__main__":
    key = jax.random.PRNGKey(0)
    k_x, k_w, k_b = jax.random.split(key, 3)

    B, in_dim, out_dim = 8, 32, 16

    # Deterministic nn.Linear-style init (uniform in +/- 1/sqrt(in_dim)), synthetic.
    bound = 1.0 / (in_dim ** 0.5)
    weight = jax.random.uniform(k_w, (out_dim, in_dim), jnp.float32, -bound, bound)
    bias = jax.random.uniform(k_b, (out_dim,), jnp.float32, -bound, bound)
    x = jax.random.normal(k_x, (B, in_dim), jnp.float32)

    out = jax.block_until_ready(npid_head(x, weight, bias))

    # Reference check in plain JAX (matches F.normalize(Linear(x)) semantics).
    # Tolerance loosened for the bf16 MXU inputs (accumulation stays f32).
    y_ref = x @ weight.T + bias
    ref = y_ref / jnp.maximum(
        jnp.sqrt(jnp.sum(y_ref * y_ref, axis=-1, keepdims=True)), 1e-12)
    assert out.shape == (B, out_dim)
    assert jnp.allclose(out, ref, atol=2e-2, rtol=2e-2), float(
        jnp.max(jnp.abs(out - ref)))

    print("KERNEL_OK")
</pallas_src>

<mosaic_0001>
module attributes {stable_mosaic.version = 11 : i64} {
  func.func @_npid_head_kernel(%arg0: i32, %arg1: memref<8x32xbf16, #tpu.memory_space<vmem>>, %arg2: memref<32x128xbf16, #tpu.memory_space<vmem>>, %arg3: memref<1x128xf32, #tpu.memory_space<vmem>>, %arg4: memref<8x128xf32, #tpu.memory_space<vmem>>) attributes {dimension_semantics = [#tpu.dimension_semantics<parallel>], iteration_bounds = array<i64: 1>, scalar_prefetch = 0 : i64, scratch_operands = 0 : i64, tpu.core_type = #tpu.core_type<tc>, window_params = [{transform_indices = @transform_0, window_bounds = array<i64: 8, 32>}, {pipeline_mode = #tpu.pipeline_mode<synchronous>, transform_indices = @transform_1, window_bounds = array<i64: 32, 128>}, {pipeline_mode = #tpu.pipeline_mode<synchronous>, transform_indices = @transform_2, window_bounds = array<i64: 1, 128>}, {transform_indices = @transform_3, window_bounds = array<i64: 8, 128>}]} {
    %c0 = arith.constant 0 : index
    %c0_0 = arith.constant 0 : index
    %0 = vector.load %arg1[%c0, %c0_0] : memref<8x32xbf16, #tpu.memory_space<vmem>>, vector<8x32xbf16>
    %c0_1 = arith.constant 0 : index
    %c0_2 = arith.constant 0 : index
    %1 = vector.load %arg2[%c0_1, %c0_2] : memref<32x128xbf16, #tpu.memory_space<vmem>>, vector<32x128xbf16>
    %cst = arith.constant dense<0.000000e+00> : vector<8x128xf32>
    %2 = tpu.matmul %0, %1, %cst {dimension_numbers = #tpu.dot_dimension_numbers<[1], [0], [0], [1], [0, 0, 1, 1], [], []>} : vector<8x32xbf16>, vector<32x128xbf16>, vector<8x128xf32> -> vector<8x128xf32>
    %c0_3 = arith.constant 0 : index
    %c0_4 = arith.constant 0 : index
    %3 = vector.load %arg3[%c0_3, %c0_4] : memref<1x128xf32, #tpu.memory_space<vmem>>, vector<1x128xf32>
    %4 = vector.broadcast %3 : vector<1x128xf32> to vector<8x128xf32>
    %5 = arith.addf %2, %4 : vector<8x128xf32>
    %6 = arith.mulf %5, %5 : vector<8x128xf32>
    %cst_5 = arith.constant dense<0.000000e+00> : vector<8xf32>
    %7 = vector.multi_reduction <add>, %6, %cst_5 [1] : vector<8x128xf32> to vector<8xf32>
    %8 = vector.shape_cast %7 : vector<8xf32> to vector<8x1xf32>
    %cst_6 = arith.constant 1.000000e-24 : f32
    %9 = vector.broadcast %cst_6 : f32 to vector<8x1xf32>
    %10 = arith.maximumf %8, %9 : vector<8x1xf32>
    %11 = math.rsqrt %10 : vector<8x1xf32>
    %12 = vector.broadcast %11 : vector<8x1xf32> to vector<8x128xf32>
    %13 = arith.mulf %5, %12 : vector<8x128xf32>
    %c0_7 = arith.constant 0 : index
    %c0_8 = arith.constant 0 : index
    %14 = vector.load %arg4[%c0_7, %c0_8] : memref<8x128xf32, #tpu.memory_space<vmem>>, vector<8x128xf32>
    tpu.vector_store %arg4[%c0_7, %c0_8], %13 {strides = array<i32>} : memref<8x128xf32, #tpu.memory_space<vmem>>, vector<8x128xf32>,
    return
  }
  func.func @transform_0(%arg0: i32) -> (i32, i32) {
    %c0_i32 = arith.constant 0 : i32
    %c0_i32_0 = arith.constant 0 : i32
    return %arg0, %c0_i32 : i32, i32
  }
  func.func @transform_1(%arg0: i32) -> (i32, i32) {
    %c0_i32 = arith.constant 0 : i32
    %c0_i32_0 = arith.constant 0 : i32
    %c0_i32_1 = arith.constant 0 : i32
    return %c0_i32, %c0_i32_0 : i32, i32
  }
  func.func @transform_2(%arg0: i32) -> (i32, i32) {
    %c0_i32 = arith.constant 0 : i32
    %c0_i32_0 = arith.constant 0 : i32
    %c0_i32_1 = arith.constant 0 : i32
    return %c0_i32, %c0_i32_0 : i32, i32
  }
  func.func @transform_3(%arg0: i32) -> (i32, i32) {
    %c0_i32 = arith.constant 0 : i32
    %c0_i32_0 = arith.constant 0 : i32
    return %arg0, %c0_i32 : i32, i32
  }
}

</mosaic_0001>

<llo_original>
// kernel: tpu_custom_call.1
$region0: #{tpu_custom_call.1}
  #allocation0 [shape = 'u32[]', space=smem, size = 0x4, offset = 0x4, fixed_abs, tag = 'smem constant byte address 0x4 - core index']
  #allocation1 [shape = 'u32[72,128]{1,0:T(1,128)}', space=vmem, size = 0x9000, scoped, tag = 'internal scratch']
  %s0 = inlined_call_operand.hbm [shape: bf16[8,32], index: 0, kind: input, shape index: {}]
  %s1 = inlined_call_operand.hbm [shape: bf16[32,128], index: 1, kind: input, shape index: {}]
  %s2 = inlined_call_operand.vmem [shape: f32[1,128], index: 2, kind: input, shape index: {}]
  %s3 = inlined_call_operand.hbm [shape: f32[8,128], index: 3, kind: output, shape index: {}]
  %s4 = sld [smem:[#allocation0]]
  $region30: #{tpu_custom_call.1} parent=0
    _
  %s6 = ssub.s32 1, %s4
  %s7 = scalar_select 0, %s6, %s4
  $region1: #{tpu_custom_call.1} parent=0
    #allocation2 [shape = 'u8[2048]{0}', space=vmem, size = 0x800, scoped, tag = 'input window, operand 0, single buffered']
    #allocation3 [shape = 's32[1]{0}', space=sflag, size = 0x4, scoped, tag = 'scoped memory for tpu_custom_call.1']
    #allocation4 [shape = 's32[1]{0}', space=sflag, size = 0x4, scoped, tag = 'scoped memory for tpu_custom_call.1']
    #allocation5 [shape = 'u8[8192]{0}', space=vmem, size = 0x2000, scoped, tag = 'input window, operand 1, single buffered']
    #allocation6 [shape = 's32[1]{0}', space=sflag, size = 0x4, scoped, tag = 'scoped memory for tpu_custom_call.1']
    #allocation7 [shape = 'u8[4096]{0}', space=vmem, size = 0x1000, scoped, tag = 'output window, operand 0, single buffered']
    %8 = vsyncpa [#allocation3], 0
    %9 = vsyncpa [#allocation6], 0
    %10 = vsyncpa [#allocation4], 0
    // Predicated region
    $region2: #{tpu_custom_call.1} parent=1 // pred_check
      _
    $region3: #{tpu_custom_call.1} parent=1 // pred_check_branch
      %12 = sbr.rel (0) target = $region5
    $region4: #{tpu_custom_call.1} parent=1 // pred_region
      %14 = vsyncadd [#allocation3], 0
      %s16 = sshll.u32 %s0, 4
      %s17 = int_to_ptr.hbm [resolvable:$true] %s16
      %s18 = sshll.u32 [#allocation2], 4
      %s19 = int_to_ptr.vmem [resolvable:$true] %s18
      %21 = dma.hbm_to_vmem [thread:$0]  %s17, 64, %s19, [#allocation3]
    $region5: #{tpu_custom_call.1} parent=1 // pred_fallthru
      _
    // Predicated region
    $region6: #{tpu_custom_call.1} parent=1 // pred_check
      _
    $region7: #{tpu_custom_call.1} parent=1 // pred_check_branch
      %23 = sbr.rel (0) target = $region9
    $region8: #{tpu_custom_call.1} parent=1 // pred_region
      %25 = vsyncadd [#allocation6], 0
      %s26 = sshll.u32 %s1, 4
      %s27 = int_to_ptr.hbm [resolvable:$true] %s26
      %s28 = sshll.u32 [#allocation5], 4
      %s29 = int_to_ptr.vmem [resolvable:$true] %s28
      %34 = dma.hbm_to_vmem [thread:$0]  %s27, 256, %s29, [#allocation6], 64, 64, 4
    $region9: #{tpu_custom_call.1} parent=1 // pred_fallthru
      _
    // Predicated region
    $region10: #{tpu_custom_call.1} parent=1 // pred_check
      _
    $region11: #{tpu_custom_call.1} parent=1 // pred_check_branch
      %36 = sbr.rel (0) target = $region13
    $region12: #{tpu_custom_call.1} parent=1 // pred_region
      _
    $region13: #{tpu_custom_call.1} parent=1 // pred_fallthru
      _
    // Predicated region
    $region14: #{tpu_custom_call.1} parent=1 // pred_check
      _
    $region15: #{tpu_custom_call.1} parent=1 // pred_check_branch
      %38 = sbr.rel (0) target = $region17
    $region16: #{tpu_custom_call.1} parent=1 // pred_region
      %40 = dma.done [#allocation3], 64
    $region17: #{tpu_custom_call.1} parent=1 // pred_fallthru
      _
    // Predicated region
    $region18: #{tpu_custom_call.1} parent=1 // pred_check
      _
    $region19: #{tpu_custom_call.1} parent=1 // pred_check_branch
      %42 = sbr.rel (0) target = $region21
    $region20: #{tpu_custom_call.1} parent=1 // pred_region
      %44 = dma.done [#allocation6], 256
    $region21: #{tpu_custom_call.1} parent=1 // pred_fallthru
      _
    %v46 = vld [vmem:[#allocation2] sm:$0xf]
    %v47 = vld [vmem:[#allocation5] sm:$0xf]
    %v48 = vld [vmem:[#allocation5 + $0x4] sm:$0xf]
    %v49 = vld [vmem:[#allocation5 + $0x8] sm:$0xf]
    %v50 = vld [vmem:[#allocation5 + $0xc] sm:$0xf]
    %v51 = vld [vmem:[%s2] sm:$0x1]
    %v53 = vperm.slane %v51, 0
    %v59 = vunpack.c.l.b16 %v47
    %v60 = vunpack.c.l.b16 %v48
    %v61 = vunpack.c.l.b16 %v49
    %v62 = vunpack.c.l.b16 %v50
    %v63 = vpack.c.b16 %v60, %v59
    %v64 = vpack.c.b16 %v62, %v61
    %vm67 = vcmask 261120
    %v69 = vsel %vm67, %v46, 0
    %71 = vmatpush.bf16.msra.mxu0 0
    %72 = vmatpush.bf16.msra.mxu0 0
    %73 = vmatpush.bf16.msra.mxu0 0
    %74 = vmatpush.bf16.msra.mxu0 0
    %75 = vmatpush.bf16.msra.mxu0 0
    %76 = vmatpush.bf16.msra.mxu0 0
    %77 = vmatpush.bf16.msra.mxu0 %v64
    %78 = vmatpush.bf16.msra.mxu0 %v63
    %79 = vmatmul.bf16.gmra.mxu0 %v69
    %v80 = vpop.f32.mrf.mxu0
    %v81 = vadd.f32 %v53, %v80
    %v82 = vpop.f32.mrf.mxu0
    %83 = vdwg.mxu0
    %v84 = vmul.f32 %v81, %v81
    %85 = vadd.xlane.f32.xlu0 %v84
    %v86 = vpop.xlane.xlu0 %85
    %v87 = vmax.f32 %v86, 1e-24
    %v88 = vrsqrt.pop %v87
    %v89 = vmul.f32 %v88, %v87
    %v90 = vmul.f32 %v89, %v88
    %v91 = vmul.f32 0.5, %v90
    %v92 = vsub.f32 1.5, %v91
    %v93 = vmul.f32 %v88, %v92
    %vm94 = vweird.f32 %v87
    %vm95 = vweird.f32 %v88
    %vm96 = vmor %vm94, %vm95
    %v97 = vsel %vm96, %v88, %v93
    %v98 = vmul.f32 %v81, %v97
    %99 = vst [vmem:[#allocation7] sm:$0xff] %v98
    // Predicated region
    $region22: #{tpu_custom_call.1} parent=1 // pred_check
      _
    $region23: #{tpu_custom_call.1} parent=1 // pred_check_branch
      %101 = sbr.rel (0) target = $region25
    $region24: #{tpu_custom_call.1} parent=1 // pred_region
      %103 = vsyncadd [#allocation4], 0
      %s105 = sshll.u32 [#allocation7], 4
      %s106 = int_to_ptr.vmem [resolvable:$true] %s105
      %s107 = sshll.u32 %s3, 4
      %s108 = int_to_ptr.hbm [resolvable:$true] %s107
      %110 = dma.vmem_to_hbm [thread:$0]  %s106, 128, %s108, [#allocation4]
    $region25: #{tpu_custom_call.1} parent=1 // pred_fallthru
      _
    // Predicated region
    $region26: #{tpu_custom_call.1} parent=1 // pred_check
      _
    $region27: #{tpu_custom_call.1} parent=1 // pred_check_branch
      %112 = sbr.rel (0) target = $region29
    $region28: #{tpu_custom_call.1} parent=1 // pred_region
      %114 = dma.done [#allocation4], 128
    $region29: #{tpu_custom_call.1} parent=1 // pred_fallthru
      _
    %115 = vsyncpa [#allocation3], 1
    %116 = vsyncpa [#allocation6], 1
    %117 = vsyncpa [#allocation4], 1

</llo_original>
